<compile_context>
chip_gen: v7x
topology: tpu7x:2x2x1
jax: 0.10.0
libtpu: 0.0.40
codegen_flags: <defaults>
</compile_context>

<pallas_src>
import functools

import jax
import jax.numpy as jnp
from jax import lax
from jax.experimental import pallas as pl
from jax.experimental.pallas import tpu as pltpu


def _hmlp_kernel(x_ref, w_ref, b_ref, o_ref, *, sub_l):
    # x_ref: (1, K, tile)  w_ref: (N, K)  b_ref: (N, 1)  o_ref: (1, N, tile)
    w = w_ref[...]
    b = b_ref[...].astype(jnp.float32)
    n_sub = x_ref.shape[2] // sub_l

    def body(i, carry):
        start = pl.multiple_of(i * sub_l, 128)
        xs = x_ref[0, :, pl.ds(start, sub_l)]
        acc = jnp.dot(w, xs, preferred_element_type=jnp.float32)
        o_ref[0, :, pl.ds(start, sub_l)] = (acc + b).astype(o_ref.dtype)
        return carry

    lax.fori_loop(0, n_sub, body, 0, unroll=True)


def h_mlp_forward(x, weight, bias, *, max_tile_l=2048):
    """x: (B, in_dim, L); weight: (out_dim, in_dim); bias: (out_dim,)."""
    B, K, L = x.shape
    N = weight.shape[0]

    # Lane tile: a multiple of 128, as large as possible (full-L whenever
    # L <= max_tile_l), no exact-divisibility requirement (edge block masked).
    tile = min(pl.cdiv(L, 128) * 128, max_tile_l)
    grid_l = pl.cdiv(L, tile)

    # v7x has 2 TensorCores: keep at least 2 parallel grid steps when B == 1.
    if B == 1 and grid_l == 1 and tile >= 256:
        tile = pl.cdiv(tile // 2, 128) * 128
        grid_l = pl.cdiv(L, tile)

    # Compute sub-tile inside the kernel: bound the f32 accumulator width so a
    # large DMA tile never creates register-spill pressure.
    if tile > 512:
        sub_l = next(c for c in (512, 256, 128) if tile % c == 0)
    else:
        sub_l = tile

    b2d = bias.reshape(N, 1)
    grid = (B, grid_l)

    x_isz = jnp.dtype(x.dtype).itemsize
    cost = pl.CostEstimate(
        flops=2 * B * L * K * N,
        transcendentals=0,
        bytes_accessed=(B * K * L * x_isz                       # x read
                        + N * K * jnp.dtype(weight.dtype).itemsize
                        + N * jnp.dtype(bias.dtype).itemsize
                        + B * N * L * x_isz),                   # out write
    )

    out = pl.pallas_call(
        functools.partial(_hmlp_kernel, sub_l=sub_l),
        out_shape=jax.ShapeDtypeStruct((B, N, L), x.dtype),
        grid_spec=pltpu.PrefetchScalarGridSpec(
            num_scalar_prefetch=0,
            grid=grid,
            in_specs=[
                pl.BlockSpec((1, K, tile), lambda b, l: (b, 0, l)),   # x slab
                pl.BlockSpec((N, K), lambda b, l: (0, 0)),            # weight (constant)
                pl.BlockSpec((N, 1), lambda b, l: (0, 0)),            # bias (constant)
            ],
            out_specs=pl.BlockSpec((1, N, tile), lambda b, l: (b, 0, l)),
        ),
        compiler_params=pltpu.CompilerParams(
            dimension_semantics=("parallel", "parallel")),
        cost_estimate=cost,
    )(x, weight, b2d)

    return out


if __name__ == "__main__":
    # Small shapes consistent with the module: batch=2, in_dim=32, out_dim=16.
    B, in_dim, out_dim = 2, 32, 16

    key = jax.random.PRNGKey(0)
    kx, kw, kb, kx2, kx3 = jax.random.split(key, 5)

    # PyTorch-style uniform(-1/sqrt(in_dim), 1/sqrt(in_dim)) init.
    bound = 1.0 / (in_dim ** 0.5)
    weight = jax.random.uniform(kw, (out_dim, in_dim), jnp.float32, -bound, bound)
    bias = jax.random.uniform(kb, (out_dim,), jnp.float32, -bound, bound)

    def ref_fn(xv):
        return jnp.einsum("bil,oi->bol", xv, weight) + bias[None, :, None]

    # Main case: L = 1024 -> full-L tile, grid (2, 1): one contiguous DMA per batch.
    L = 1024
    x = jax.random.normal(kx, (B, in_dim, L), jnp.float32)
    out = jax.block_until_ready(h_mlp_forward(x, weight, bias))
    assert out.shape == (B, out_dim, L)
    assert jnp.allclose(out, ref_fn(x), atol=1e-5, rtol=1e-5)

    # Ragged case: L not a multiple of 128 -> no wrapper pad; edge block masked.
    L2 = 100
    x2 = jax.random.normal(kx2, (B, in_dim, L2), jnp.float32)
    out2 = jax.block_until_ready(h_mlp_forward(x2, weight, bias))
    assert out2.shape == (B, out_dim, L2)
    assert jnp.allclose(out2, ref_fn(x2), atol=1e-5, rtol=1e-5)

    # Awkward length (1152 = 9*128): single full-L tile instead of 9 tiny steps,
    # inner compute loop splits it into 128-lane sub-slices.
    L3 = 1152
    x3 = jax.random.normal(kx3, (B, in_dim, L3), jnp.float32)
    out3 = jax.block_until_ready(h_mlp_forward(x3, weight, bias))
    assert out3.shape == (B, out_dim, L3)
    assert jnp.allclose(out3, ref_fn(x3), atol=1e-5, rtol=1e-5)

    print("KERNEL_OK")
</pallas_src>

<mosaic_0001>
module attributes {stable_mosaic.version = 11 : i64} {
  func.func @_hmlp_kernel(%arg0: i32, %arg1: i32, %arg2: memref<1x32x1024xf32, #tpu.memory_space<vmem>>, %arg3: memref<16x32xf32, #tpu.memory_space<vmem>>, %arg4: memref<16x1xf32, #tpu.memory_space<vmem>>, %arg5: memref<1x16x1024xf32, #tpu.memory_space<vmem>>) attributes {dimension_semantics = [#tpu.dimension_semantics<parallel>, #tpu.dimension_semantics<parallel>], iteration_bounds = array<i64: 2, 1>, scalar_prefetch = 0 : i64, scratch_operands = 0 : i64, tpu.core_type = #tpu.core_type<tc>, window_params = [{transform_indices = @transform_0, window_bounds = array<i64: 1, 32, 1024>}, {pipeline_mode = #tpu.pipeline_mode<synchronous>, transform_indices = @transform_1, window_bounds = array<i64: 16, 32>}, {pipeline_mode = #tpu.pipeline_mode<synchronous>, transform_indices = @transform_2, window_bounds = array<i64: 16, 1>}, {transform_indices = @transform_3, window_bounds = array<i64: 1, 16, 1024>}]} {
    %c0 = arith.constant 0 : index
    %c0_0 = arith.constant 0 : index
    %0 = vector.load %arg3[%c0, %c0_0] : memref<16x32xf32, #tpu.memory_space<vmem>>, vector<16x32xf32>
    %c0_1 = arith.constant 0 : index
    %c0_2 = arith.constant 0 : index
    %1 = vector.load %arg4[%c0_1, %c0_2] : memref<16x1xf32, #tpu.memory_space<vmem>>, vector<16x1xf32>
    %c0_i32 = arith.constant 0 : i32
    %c512_i32 = arith.constant 512 : i32
    %2 = arith.muli %c0_i32, %c512_i32 : i32
    %3 = tpu.assume_multiple %2, 128 : i32
    %c0_3 = arith.constant 0 : index
    %c0_4 = arith.constant 0 : index
    %4 = arith.index_cast %3 : i32 to index
    %5 = vector.load %arg2[%c0_3, %c0_4, %4] : memref<1x32x1024xf32, #tpu.memory_space<vmem>>, vector<1x32x512xf32>
    %6 = vector.shape_cast %5 : vector<1x32x512xf32> to vector<32x512xf32>
    %cst = arith.constant dense<0.000000e+00> : vector<16x512xf32>
    %7 = tpu.matmul %0, %6, %cst {dimension_numbers = #tpu.dot_dimension_numbers<[1], [0], [0], [1], [0, 0, 1, 1], [], []>} : vector<16x32xf32>, vector<32x512xf32>, vector<16x512xf32> -> vector<16x512xf32>
    %8 = vector.broadcast %1 : vector<16x1xf32> to vector<16x512xf32>
    %9 = arith.addf %7, %8 : vector<16x512xf32>
    %c0_5 = arith.constant 0 : index
    %c0_6 = arith.constant 0 : index
    %10 = arith.index_cast %3 : i32 to index
    %11 = vector.load %arg5[%c0_5, %c0_6, %10] : memref<1x16x1024xf32, #tpu.memory_space<vmem>>, vector<1x16x512xf32>
    %12 = vector.shape_cast %11 : vector<1x16x512xf32> to vector<16x512xf32>
    %13 = vector.shape_cast %9 : vector<16x512xf32> to vector<1x16x512xf32>
    tpu.vector_store %arg5[%c0_5, %c0_6, %10], %13 {strides = array<i32>} : memref<1x16x1024xf32, #tpu.memory_space<vmem>>, vector<1x16x512xf32>,
    %c1_i32 = arith.constant 1 : i32
    %c512_i32_7 = arith.constant 512 : i32
    %14 = arith.muli %c1_i32, %c512_i32_7 : i32
    %15 = tpu.assume_multiple %14, 128 : i32
    %c0_8 = arith.constant 0 : index
    %c0_9 = arith.constant 0 : index
    %16 = arith.index_cast %15 : i32 to index
    %17 = vector.load %arg2[%c0_8, %c0_9, %16] : memref<1x32x1024xf32, #tpu.memory_space<vmem>>, vector<1x32x512xf32>
    %18 = vector.shape_cast %17 : vector<1x32x512xf32> to vector<32x512xf32>
    %cst_10 = arith.constant dense<0.000000e+00> : vector<16x512xf32>
    %19 = tpu.matmul %0, %18, %cst_10 {dimension_numbers = #tpu.dot_dimension_numbers<[1], [0], [0], [1], [0, 0, 1, 1], [], []>} : vector<16x32xf32>, vector<32x512xf32>, vector<16x512xf32> -> vector<16x512xf32>
    %20 = vector.broadcast %1 : vector<16x1xf32> to vector<16x512xf32>
    %21 = arith.addf %19, %20 : vector<16x512xf32>
    %c0_11 = arith.constant 0 : index
    %c0_12 = arith.constant 0 : index
    %22 = arith.index_cast %15 : i32 to index
    %23 = vector.load %arg5[%c0_11, %c0_12, %22] : memref<1x16x1024xf32, #tpu.memory_space<vmem>>, vector<1x16x512xf32>
    %24 = vector.shape_cast %23 : vector<1x16x512xf32> to vector<16x512xf32>
    %25 = vector.shape_cast %21 : vector<16x512xf32> to vector<1x16x512xf32>
    tpu.vector_store %arg5[%c0_11, %c0_12, %22], %25 {strides = array<i32>} : memref<1x16x1024xf32, #tpu.memory_space<vmem>>, vector<1x16x512xf32>,
    %c2_i32 = arith.constant 2 : i32
    return
  }
  func.func @transform_0(%arg0: i32, %arg1: i32) -> (i32, i32, i32) {
    %c0_i32 = arith.constant 0 : i32
    %c0_i32_0 = arith.constant 0 : i32
    return %arg0, %c0_i32, %arg1 : i32, i32, i32
  }
  func.func @transform_1(%arg0: i32, %arg1: i32) -> (i32, i32) {
    %c0_i32 = arith.constant 0 : i32
    %c0_i32_0 = arith.constant 0 : i32
    %c0_i32_1 = arith.constant 0 : i32
    return %c0_i32, %c0_i32_0 : i32, i32
  }
  func.func @transform_2(%arg0: i32, %arg1: i32) -> (i32, i32) {
    %c0_i32 = arith.constant 0 : i32
    %c0_i32_0 = arith.constant 0 : i32
    %c0_i32_1 = arith.constant 0 : i32
    return %c0_i32, %c0_i32_0 : i32, i32
  }
  func.func @transform_3(%arg0: i32, %arg1: i32) -> (i32, i32, i32) {
    %c0_i32 = arith.constant 0 : i32
    %c0_i32_0 = arith.constant 0 : i32
    return %arg0, %c0_i32, %arg1 : i32, i32, i32
  }
}

</mosaic_0001>

<llo_original>
// kernel: tpu_custom_call.1
$region0: #{tpu_custom_call.1}
  #allocation0 [shape = 'u32[]', space=smem, size = 0x4, offset = 0x4, fixed_abs, tag = 'smem constant byte address 0x4 - core index']
  #allocation1 [shape = 'u32[144,128]{1,0:T(1,128)}', space=vmem, size = 0x12000, scoped, tag = 'internal scratch']
  %s0 = inlined_call_operand.hbm [shape: f32[2,32,1024], index: 0, kind: input, shape index: {}]
  %s1 = inlined_call_operand.vmem [shape: f32[16,32], index: 1, kind: input, shape index: {}]
  %s2 = inlined_call_operand.vmem [shape: f32[16,1], index: 2, kind: input, shape index: {}]
  %s3 = inlined_call_operand.hbm [shape: f32[2,16,1024], index: 3, kind: output, shape index: {}]
  %s4 = sld [smem:[#allocation0]]
  $region49: #{tpu_custom_call.1} parent=0
    _
  %s6 = ssub.s32 1, %s4
  %s7 = scalar_select 0, %s6, %s4
  $region1: #{tpu_custom_call.1} parent=0
    #allocation2 [shape = 'u8[262144]{0}', space=vmem, size = 0x40000, scoped, tag = 'input window, operand 0']
    #allocation3 [shape = 's32[2]{0}', space=sflag, size = 0x8, scoped, tag = 'scoped memory for tpu_custom_call.1']
    #allocation4 [shape = 's32[2]{0}', space=sflag, size = 0x8, scoped, tag = 'scoped memory for tpu_custom_call.1']
    #allocation5 [shape = 'u8[131072]{0}', space=vmem, size = 0x20000, scoped, tag = 'output window, operand 0']
    %8 = vsyncpa [#allocation3], 0
    %s9 = scalar_lea.sflag [#allocation3], 1
    %10 = vsyncpa %s9, 0
    %11 = vsyncpa [#allocation4], 0
    %s12 = scalar_lea.sflag [#allocation4], 1
    %13 = vsyncpa %s12, 0
    loop: start=0, step=1, limit=4
    $region2: #{tpu_custom_call.1} parent=1 // loop_pre_header
      _
    $region3: #{tpu_custom_call.1} parent=1 // loop_header
      %s15 = sphi 0, %s19
      %p16 = scmp.ge.s32.totalorder %s15, 4
      %s22 = sphi 0, %s34
      %s23 = sphi 0, %s30
      %s24 = sphi 0, %s22
      %s25 = sphi 0, %s23
      %s26 = sphi 0, %s24
      %s27 = sphi 0, %s25
      %s39 = sphi 0, %s41
      %s42 = sphi 0, %s39
      %s43 = sphi 0, %s42
      %s59 = sphi 0, %s43
      %s63 = sphi 0, %s63
      %s65 = sphi 0, %s63
      %s66 = sphi 0, %s65
      %s80 = sphi 0, %s66
      %s84 = sphi 0, %s84
      %s86 = sphi 0, %s84
      %s87 = sphi 0, %s86
      %s101 = sphi 0, %s87
      %s109 = sphi 0, %s111
      %s112 = sphi 0, %s109
      %s113 = sphi 0, %s112
      %s129 = sphi 0, %s113
    $region4: #{tpu_custom_call.1} parent=1 // loop_header_branch
      %18 = sbr.rel (%p16) target = $region8
    $region5: #{tpu_custom_call.1} parent=1 // loop_body
      %s20 = ssub.s32 %s15, 1
      %s21 = ssub.s32 %s15, 2
      %s28 = sadd.s32 1, %s23
      %p29 = scmp.ge.s32.totalorder %s28, 1
      %s30 = scalar_select %p29, 0, %s28
      %s31 = sadd.s32 1, %s22
      %s32 = scalar_select %p29, %s31, %s22
      %p33 = scmp.ge.s32.totalorder %s32, 2
      %s34 = scalar_select %p33, 0, %s32
      %s35 = ssub.s32 %s22, %s34
      %s36 = ssub.s32 %s23, %s30
      %s37 = sor.u32 %s35, %s36
      %p38 = scmp.eq.s32.totalorder %s37, 0
      %s40 = sadd.s32 %s39, 1
      %s41 = scalar_select %p38, %s39, %s40
      %p44 = pneg %p38
      %p45 = scmp.eq.s32.totalorder %s15, 1
      %p46 = por %p44, %p45
      %p47 = scmp.ne.s32.totalorder %s39, %s42
      %p48 = scmp.eq.s32.totalorder %s15, 0
      %p49 = por %p47, %p48
      %p50 = scmp.ne.s32.totalorder %s39, %s42
      %p51 = scmp.eq.s32.totalorder %s20, 1
      %p52 = por %p50, %p51
      %p53 = scmp.ne.s32.totalorder %s42, %s43
      %p54 = scmp.eq.s32.totalorder %s20, 0
      %p55 = por %p53, %p54
      %p56 = scmp.ne.s32.totalorder %s42, %s43
      %p57 = scmp.eq.s32.totalorder %s21, 1
      %p58 = por %p56, %p57
      %p60 = scmp.ne.s32.totalorder %s43, %s59
      %p61 = scmp.eq.s32.totalorder %s21, 0
      %p62 = por %p60, %p61
      %s64 = sadd.s32 %s63, 1
      %p67 = scmp.eq.s32.totalorder %s15, 1
      %p68 = scmp.ne.s32.totalorder %s63, %s65
      %p69 = scmp.eq.s32.totalorder %s15, 0
      %p70 = por %p68, %p69
      %p71 = scmp.ne.s32.totalorder %s63, %s65
      %p72 = scmp.eq.s32.totalorder %s20, 1
      %p73 = por %p71, %p72
      %p74 = scmp.ne.s32.totalorder %s65, %s66
      %p75 = scmp.eq.s32.totalorder %s20, 0
      %p76 = por %p74, %p75
      %p77 = scmp.ne.s32.totalorder %s65, %s66
      %p78 = scmp.eq.s32.totalorder %s21, 1
      %p79 = por %p77, %p78
      %p81 = scmp.ne.s32.totalorder %s66, %s80
      %p82 = scmp.eq.s32.totalorder %s21, 0
      %p83 = por %p81, %p82
      %s85 = sadd.s32 %s84, 1
      %p88 = scmp.eq.s32.totalorder %s15, 1
      %p89 = scmp.ne.s32.totalorder %s84, %s86
      %p90 = scmp.eq.s32.totalorder %s15, 0
      %p91 = por %p89, %p90
      %p92 = scmp.ne.s32.totalorder %s84, %s86
      %p93 = scmp.eq.s32.totalorder %s20, 1
      %p94 = por %p92, %p93
      %p95 = scmp.ne.s32.totalorder %s86, %s87
      %p96 = scmp.eq.s32.totalorder %s20, 0
      %p97 = por %p95, %p96
      %p98 = scmp.ne.s32.totalorder %s86, %s87
      %p99 = scmp.eq.s32.totalorder %s21, 1
      %p100 = por %p98, %p99
      %p102 = scmp.ne.s32.totalorder %s87, %s101
      %p103 = scmp.eq.s32.totalorder %s21, 0
      %p104 = por %p102, %p103
      %s105 = ssub.s32 %s22, %s34
      %s106 = ssub.s32 %s23, %s30
      %s107 = sor.u32 %s105, %s106
      %p108 = scmp.eq.s32.totalorder %s107, 0
      %s110 = sadd.s32 %s109, 1
      %s111 = scalar_select %p108, %s109, %s110
      %p114 = pneg %p108
      %p115 = scmp.eq.s32.totalorder %s15, 1
      %p116 = por %p114, %p115
      %p117 = scmp.ne.s32.totalorder %s109, %s112
      %p118 = scmp.eq.s32.totalorder %s15, 0
      %p119 = por %p117, %p118
      %p120 = scmp.ne.s32.totalorder %s109, %s112
      %p121 = scmp.eq.s32.totalorder %s20, 1
      %p122 = por %p120, %p121
      %p123 = scmp.ne.s32.totalorder %s112, %s113
      %p124 = scmp.eq.s32.totalorder %s20, 0
      %p125 = por %p123, %p124
      %p126 = scmp.ne.s32.totalorder %s112, %s113
      %p127 = scmp.eq.s32.totalorder %s21, 1
      %p128 = por %p126, %p127
      %p130 = scmp.ne.s32.totalorder %s113, %s129
      %p131 = scmp.eq.s32.totalorder %s21, 0
      %p132 = por %p130, %p131
      %p133 = scmp.le.s32.totalorder 1, %s15
      %p134 = scmp.lt.s32.totalorder %s15, 3
      %p135 = pnand %p133, %p134
      %p136 = pneg %p135
      // Predicated region
      $region9: #{tpu_custom_call.1} parent=5 // pred_check
        _
      $region10: #{tpu_custom_call.1} parent=5 // pred_check_branch
        %138 = sbr.rel (%p135) target = $region12
      $region11: #{tpu_custom_call.1} parent=5 // pred_region
        %s139 = ssub.s32 %s15, 1
        // Predicated region
        $region13: #{tpu_custom_call.1} parent=11 // pred_check
          %p140 = pneg %p76
        $region14: #{tpu_custom_call.1} parent=11 // pred_check_branch
          %142 = sbr.rel (%p140) target = $region16
        $region15: #{tpu_custom_call.1} parent=11 // pred_region
          _
        $region16: #{tpu_custom_call.1} parent=11 // pred_fallthru
          _
        // Predicated region
        $region17: #{tpu_custom_call.1} parent=11 // pred_check
          %p143 = pneg %p97
        $region18: #{tpu_custom_call.1} parent=11 // pred_check_branch
          %145 = sbr.rel (%p143) target = $region20
        $region19: #{tpu_custom_call.1} parent=11 // pred_region
          _
        $region20: #{tpu_custom_call.1} parent=11 // pred_fallthru
          _
      $region12: #{tpu_custom_call.1} parent=5 // pred_fallthru
        _
      %p146 = scmp.lt.s32.totalorder %s15, 2
      // Predicated region
      $region21: #{tpu_custom_call.1} parent=5 // pred_check
        %p147 = pneg %p146
      $region22: #{tpu_custom_call.1} parent=5 // pred_check_branch
        %149 = sbr.rel (%p147) target = $region24
      $region23: #{tpu_custom_call.1} parent=5 // pred_region
        // Predicated region
        $region25: #{tpu_custom_call.1} parent=23 // pred_check
          %p150 = pneg %p49
        $region26: #{tpu_custom_call.1} parent=23 // pred_check_branch
          %152 = sbr.rel (%p150) target = $region28
        $region27: #{tpu_custom_call.1} parent=23 // pred_region
          %s153 = sand.u32 %s39, 1
          %s154 = scalar_lea.sflag [#allocation3], %s153
          %s155 = sand.u32 %s39, 1
          %s156 = smul.addr %s155, 256
          %s157 = scalar_lea.vmem [#allocation2], %s156
          %s158 = smul.u32 8, %s23
          %s160 = ssub.s32 4096, 4096
          %161 = vsyncadd %s154, %s160
          %s162 = smul.addr %s22, 32
          %s163 = sadd.s32 %s158, %s162
          %s164 = smul.addr %s163, 128
          %s165 = scalar_lea.hbm %s0, %s164
          %s166 = sshll.u32 %s157, 4
          %s167 = int_to_ptr.vmem [resolvable:$true] %s166
          %172 = dma.hbm_to_vmem [thread:$0]  %s165, 4096, %s167, %s154, 1024, 1024, 64
        $region28: #{tpu_custom_call.1} parent=23 // pred_fallthru
          _
      $region24: #{tpu_custom_call.1} parent=5 // pred_fallthru
        _
      %p173 = scmp.le.s32.totalorder 1, %s15
      %p174 = scmp.lt.s32.totalorder %s15, 3
      %p175 = pnand %p173, %p174
      %p176 = pneg %p175
      // Predicated region
      $region29: #{tpu_custom_call.1} parent=5 // pred_check
        _
      $region30: #{tpu_custom_call.1} parent=5 // pred_check_branch
        %178 = sbr.rel (%p175) target = $region32
      $region31: #{tpu_custom_call.1} parent=5 // pred_region
        %s179 = ssub.s32 %s15, 1
        %s180 = sand.u32 %s42, 1
        %s181 = scalar_lea.sflag [#allocation3], %s180
        %s182 = sand.u32 %s42, 1
        %s183 = smul.addr %s182, 256
        %s184 = scalar_lea.vmem [#allocation2], %s183
        // Predicated region
        $region33: #{tpu_custom_call.1} parent=31 // pred_check
          %p185 = pneg %p55
        $region34: #{tpu_custom_call.1} parent=31 // pred_check_branch
          %187 = sbr.rel (%p185) target = $region36
        $region35: #{tpu_custom_call.1} parent=31 // pred_region
          %188 = dma.done %s181, 4096
        $region36: #{tpu_custom_call.1} parent=31 // pred_fallthru
          _
        %s189 = sand.u32 %s42, 1
        %s190 = scalar_lea.sflag [#allocation3], %s189
        %s191 = sand.u32 %s42, 1
        %s192 = smul.addr %s191, 256
        %s193 = scalar_lea.vmem [#allocation2], %s192
        %p194 = pneg %p55
        %p195 = pneg %p52
        %p196 = pneg %p76
        %p197 = pneg %p73
        %p198 = pneg %p97
        %p199 = pneg %p94
        %p200 = pneg %p125
        %p201 = pneg %p122
        %s202 = sand.u32 %s112, 1
        %s203 = scalar_lea.sflag [#allocation4], %s202
        %s204 = sand.u32 %s112, 1
        %s205 = smul.addr %s204, 128
        %s206 = scalar_lea.vmem [#allocation5], %s205
        %s207 = smul.u32 8, %s25
        %s208 = smul.u32 8, %s25
        %v209 = vld [vmem:[%s1] sm:$0xff]
        %v210 = vld [vmem:[%s1 + $0x8] sm:$0xff]
        %v211 = vld [vmem:[%s2] sm:$0xff]
        %v212 = vld [vmem:[%s2 + $0x8] sm:$0xff]
        %v213 = vld [vmem:[%s184] sm:$0xff]
        %v214 = vld [vmem:[%s184 + $0x8] sm:$0xff]
        %v215 = vld [vmem:[%s184 + $0x10] sm:$0xff]
        %v216 = vld [vmem:[%s184 + $0x18] sm:$0xff]
        %v217 = vld [vmem:[%s184 + $0x40] sm:$0xff]
        %v218 = vld [vmem:[%s184 + $0x48] sm:$0xff]
        %v219 = vld [vmem:[%s184 + $0x50] sm:$0xff]
        %v220 = vld [vmem:[%s184 + $0x58] sm:$0xff]
        %v221 = vld [vmem:[%s184 + $0x80] sm:$0xff]
        %v222 = vld [vmem:[%s184 + $0x88] sm:$0xff]
        %v223 = vld [vmem:[%s184 + $0x90] sm:$0xff]
        %v224 = vld [vmem:[%s184 + $0x98] sm:$0xff]
        %v225 = vld [vmem:[%s184 + $0xc0] sm:$0xff]
        %v226 = vld [vmem:[%s184 + $0xc8] sm:$0xff]
        %v227 = vld [vmem:[%s184 + $0xd0] sm:$0xff]
        %v228 = vld [vmem:[%s184 + $0xd8] sm:$0xff]
        %230 = vset.pattern.permute.xlu0 0
        %231 = vperm.xlu0 %230, %v211
        %v232 = vpop.permute.xlu0 %231
        %235 = vset.pattern.permute.xlu0 0
        %236 = vperm.xlu0 %235, %v212
        %v237 = vpop.permute.xlu0 %236
        %vm239 = vcmask 261120
        %v241 = vsel %vm239, %v209, 0
        %v244 = vsel %vm239, %v210, 0
        %246 = vmatprep.subr.mxu0 %v214
        %247 = vmatpush1.msra.mxu0 %v213
        %248 = vmatprep.subr.mxu0 %v218
        %249 = vmatpush1.msra.mxu0 %v217
        %250 = vmatprep.subr.mxu0 %v222
        %251 = vmatpush1.msra.mxu0 %v221
        %252 = vmatprep.subr.mxu0 %v226
        %253 = vmatpush1.msra.mxu0 %v225
        %254 = vmatprep.subr.mxu0 0.0
        %255 = vmatpush1.msra.mxu0 0.0
        %256 = vmatprep.subr.mxu0 0.0
        %257 = vmatpush1.msra.mxu0 0.0
        %258 = vmatprep.subr.mxu0 0.0
        %259 = vmatpush1.msra.mxu0 0.0
        %260 = vmatprep.subr.mxu0 0.0
        %261 = vmatpush1.msra.mxu0 0.0
        %262 = vmatprep.subr.mxu0 0.0
        %263 = vmatpush1.msra.mxu0 0.0
        %264 = vmatprep.subr.mxu0 0.0
        %265 = vmatpush1.msra.mxu0 0.0
        %266 = vmatprep.subr.mxu0 0.0
        %267 = vmatpush1.msra.mxu0 0.0
        %268 = vmatprep.subr.mxu0 0.0
        %269 = vmatpush1.msra.mxu0 0.0
        %270 = vmatprep.subr.mxu0 0.0
        %271 = vmatpush1.msra.mxu0 0.0
        %272 = vmatprep.subr.mxu0 0.0
        %273 = vmatpush1.msra.mxu0 0.0
        %274 = vmatprep.subr.mxu0 0.0
        %275 = vmatpush1.msra.mxu0 0.0
        %276 = vmatprep.subr.mxu0 0.0
        %277 = vmatpush1.msra.mxu0 0.0
        %278 = vmatprep.subr.mxu0 0.0
        %279 = vmatpush1.msra.mxu0 0.0
        %280 = vmatprep.subr.mxu0 0.0
        %281 = vmatpush1.msra.mxu0 0.0
        %282 = vmatprep.subr.mxu0 0.0
        %283 = vmatpush1.msra.mxu0 0.0
        %284 = vmatprep.subr.mxu0 0.0
        %285 = vmatpush1.msra.mxu0 0.0
        %286 = vmatprep.subr.mxu0 0.0
        %287 = vmatpush1.msra.mxu0 0.0
        %288 = vmatprep.subr.mxu0 0.0
        %289 = vmatpush1.msra.mxu0 0.0
        %290 = vmatprep.subr.mxu0 0.0
        %291 = vmatpush1.msra.mxu0 0.0
        %292 = vmatprep.subr.mxu0 0.0
        %293 = vmatpush1.msra.mxu0 0.0
        %294 = vmatprep.subr.mxu0 0.0
        %295 = vmatpush1.msra.mxu0 0.0
        %296 = vmatprep.subr.mxu0 0.0
        %297 = vmatpush1.msra.mxu0 0.0
        %298 = vmatprep.subr.mxu0 0.0
        %299 = vmatpush1.msra.mxu0 0.0
        %300 = vmatprep.subr.mxu0 0.0
        %301 = vmatpush1.msra.mxu0 0.0
        %302 = vmatprep.subr.mxu0 0.0
        %303 = vmatpush1.msra.mxu0 0.0
        %304 = vmatprep.subr.mxu0 0.0
        %305 = vmatpush1.msra.mxu0 0.0
        %306 = vmatprep.subr.mxu0 0.0
        %307 = vmatpush1.msra.mxu0 0.0
        %308 = vmatprep.subr.mxu0 0.0
        %309 = vmatpush1.msra.mxu0 0.0
        %310 = vmatprep.mubr.f32.mxu0 0.0
        %311 = vmatmul.mubr.f32.gmra.mrb[0].mxu0 %v241
        %v312 = vpop.f32.mrb[0].mxu0
        %v313 = vadd.f32 %v232, %v312
        %v314 = vpop.f32.mrb[0].mxu0
        %v315 = vadd.f32 %v232, %v314
        %316 = vmatprep.mubr.f32.mxu0 0.0
        %317 = vmatmul.mubr.f32.gmra.mrb[0].mxu0 %v244
        %v318 = vpop.f32.mrb[0].mxu0
        %v319 = vadd.f32 %v237, %v318
        %v320 = vpop.f32.mrb[0].mxu0
        %v321 = vadd.f32 %v237, %v320
        %322 = vdwg.mxu0
        %323 = vmatprep.subr.mxu0 %v216
        %324 = vmatpush1.msra.mxu0 %v215
        %325 = vmatprep.subr.mxu0 %v220
        %326 = vmatpush1.msra.mxu0 %v219
        %327 = vmatprep.subr.mxu0 %v224
        %328 = vmatpush1.msra.mxu0 %v223
        %329 = vmatprep.subr.mxu0 %v228
        %330 = vmatpush1.msra.mxu0 %v227
        %331 = vmatprep.subr.mxu0 0.0
        %332 = vmatpush1.msra.mxu0 0.0
        %333 = vmatprep.subr.mxu0 0.0
        %334 = vmatpush1.msra.mxu0 0.0
        %335 = vmatprep.subr.mxu0 0.0
        %336 = vmatpush1.msra.mxu0 0.0
        %337 = vmatprep.subr.mxu0 0.0
        %338 = vmatpush1.msra.mxu0 0.0
        %339 = vmatprep.subr.mxu0 0.0
        %340 = vmatpush1.msra.mxu0 0.0
        %341 = vmatprep.subr.mxu0 0.0
        %342 = vmatpush1.msra.mxu0 0.0
        %343 = vmatprep.subr.mxu0 0.0
        %344 = vmatpush1.msra.mxu0 0.0
        %345 = vmatprep.subr.mxu0 0.0
        %346 = vmatpush1.msra.mxu0 0.0
        %347 = vmatprep.subr.mxu0 0.0
        %348 = vmatpush1.msra.mxu0 0.0
        %349 = vmatprep.subr.mxu0 0.0
        %350 = vmatpush1.msra.mxu0 0.0
        %351 = vmatprep.subr.mxu0 0.0
        %352 = vmatpush1.msra.mxu0 0.0
        %353 = vmatprep.subr.mxu0 0.0
        %354 = vmatpush1.msra.mxu0 0.0
        %355 = vmatprep.subr.mxu0 0.0
        %356 = vmatpush1.msra.mxu0 0.0
        %357 = vmatprep.subr.mxu0 0.0
        %358 = vmatpush1.msra.mxu0 0.0
        %359 = vmatprep.subr.mxu0 0.0
        %360 = vmatpush1.msra.mxu0 0.0
        %361 = vmatprep.subr.mxu0 0.0
        %362 = vmatpush1.msra.mxu0 0.0
        %363 = vmatprep.subr.mxu0 0.0
        %364 = vmatpush1.msra.mxu0 0.0
        %365 = vmatprep.subr.mxu0 0.0
        %366 = vmatpush1.msra.mxu0 0.0
        %367 = vmatprep.subr.mxu0 0.0
        %368 = vmatpush1.msra.mxu0 0.0
        %369 = vmatprep.subr.mxu0 0.0
        %370 = vmatpush1.msra.mxu0 0.0
        %371 = vmatprep.subr.mxu0 0.0
        %372 = vmatpush1.msra.mxu0 0.0
        %373 = vmatprep.subr.mxu0 0.0
        %374 = vmatpush1.msra.mxu0 0.0
        %375 = vmatprep.subr.mxu0 0.0
        %376 = vmatpush1.msra.mxu0 0.0
        %377 = vmatprep.subr.mxu0 0.0
        %378 = vmatpush1.msra.mxu0 0.0
        %379 = vmatprep.subr.mxu0 0.0
        %380 = vmatpush1.msra.mxu0 0.0
        %381 = vmatprep.subr.mxu0 0.0
        %382 = vmatpush1.msra.mxu0 0.0
        %383 = vmatprep.subr.mxu0 0.0
        %384 = vmatpush1.msra.mxu0 0.0
        %385 = vmatprep.subr.mxu0 0.0
        %386 = vmatpush1.msra.mxu0 0.0
        %387 = vmatprep.mubr.f32.mxu0 0.0
        %388 = vmatmul.mubr.f32.gmra.mrb[0].mxu0 %v241
        %v389 = vpop.f32.mrb[0].mxu0
        %v390 = vadd.f32 %v232, %v389
        %v391 = vpop.f32.mrb[0].mxu0
        %v392 = vadd.f32 %v232, %v391
        %393 = vmatprep.mubr.f32.mxu0 0.0
        %394 = vmatmul.mubr.f32.gmra.mrb[0].mxu0 %v244
        %v395 = vpop.f32.mrb[0].mxu0
        %v396 = vadd.f32 %v237, %v395
        %v397 = vpop.f32.mrb[0].mxu0
        %v398 = vadd.f32 %v237, %v397
        %399 = vdwg.mxu0
        %400 = vst [vmem:[%s206] sm:$0xff] %v313
        %401 = vst [vmem:[%s206 + $0x8] sm:$0xff] %v315
        %402 = vst [vmem:[%s206 + $0x10] sm:$0xff] %v390
        %403 = vst [vmem:[%s206 + $0x18] sm:$0xff] %v392
        %404 = vst [vmem:[%s206 + $0x40] sm:$0xff] %v319
        %405 = vst [vmem:[%s206 + $0x48] sm:$0xff] %v321
        %406 = vst [vmem:[%s206 + $0x50] sm:$0xff] %v396
        %407 = vst [vmem:[%s206 + $0x58] sm:$0xff] %v398
        %s408 = scalar_lea.vmem %s184, 32 [#allocation2]
        %v409 = vld [vmem:[%s408] sm:$0xff]
        %v410 = vld [vmem:[%s408 + $0x8] sm:$0xff]
        %v411 = vld [vmem:[%s408 + $0x10] sm:$0xff]
        %v412 = vld [vmem:[%s408 + $0x18] sm:$0xff]
        %v413 = vld [vmem:[%s408 + $0x40] sm:$0xff]
        %v414 = vld [vmem:[%s408 + $0x48] sm:$0xff]
        %v415 = vld [vmem:[%s408 + $0x50] sm:$0xff]
        %v416 = vld [vmem:[%s408 + $0x58] sm:$0xff]
        %v417 = vld [vmem:[%s408 + $0x80] sm:$0xff]
        %v418 = vld [vmem:[%s408 + $0x88] sm:$0xff]
        %v419 = vld [vmem:[%s408 + $0x90] sm:$0xff]
        %v420 = vld [vmem:[%s408 + $0x98] sm:$0xff]
        %v421 = vld [vmem:[%s408 + $0xc0] sm:$0xff]
        %v422 = vld [vmem:[%s408 + $0xc8] sm:$0xff]
        %v423 = vld [vmem:[%s408 + $0xd0] sm:$0xff]
        %v424 = vld [vmem:[%s408 + $0xd8] sm:$0xff]
        %425 = vmatprep.subr.mxu0 %v410
        %426 = vmatpush1.msra.mxu0 %v409
        %427 = vmatprep.subr.mxu0 %v414
        %428 = vmatpush1.msra.mxu0 %v413
        %429 = vmatprep.subr.mxu0 %v418
        %430 = vmatpush1.msra.mxu0 %v417
        %431 = vmatprep.subr.mxu0 %v422
        %432 = vmatpush1.msra.mxu0 %v421
        %433 = vmatprep.subr.mxu0 0.0
        %434 = vmatpush1.msra.mxu0 0.0
        %435 = vmatprep.subr.mxu0 0.0
        %436 = vmatpush1.msra.mxu0 0.0
        %437 = vmatprep.subr.mxu0 0.0
        %438 = vmatpush1.msra.mxu0 0.0
        %439 = vmatprep.subr.mxu0 0.0
        %440 = vmatpush1.msra.mxu0 0.0
        %441 = vmatprep.subr.mxu0 0.0
        %442 = vmatpush1.msra.mxu0 0.0
        %443 = vmatprep.subr.mxu0 0.0
        %444 = vmatpush1.msra.mxu0 0.0
        %445 = vmatprep.subr.mxu0 0.0
        %446 = vmatpush1.msra.mxu0 0.0
        %447 = vmatprep.subr.mxu0 0.0
        %448 = vmatpush1.msra.mxu0 0.0
        %449 = vmatprep.subr.mxu0 0.0
        %450 = vmatpush1.msra.mxu0 0.0
        %451 = vmatprep.subr.mxu0 0.0
        %452 = vmatpush1.msra.mxu0 0.0
        %453 = vmatprep.subr.mxu0 0.0
        %454 = vmatpush1.msra.mxu0 0.0
        %455 = vmatprep.subr.mxu0 0.0
        %456 = vmatpush1.msra.mxu0 0.0
        %457 = vmatprep.subr.mxu0 0.0
        %458 = vmatpush1.msra.mxu0 0.0
        %459 = vmatprep.subr.mxu0 0.0
        %460 = vmatpush1.msra.mxu0 0.0
        %461 = vmatprep.subr.mxu0 0.0
        %462 = vmatpush1.msra.mxu0 0.0
        %463 = vmatprep.subr.mxu0 0.0
        %464 = vmatpush1.msra.mxu0 0.0
        %465 = vmatprep.subr.mxu0 0.0
        %466 = vmatpush1.msra.mxu0 0.0
        %467 = vmatprep.subr.mxu0 0.0
        %468 = vmatpush1.msra.mxu0 0.0
        %469 = vmatprep.subr.mxu0 0.0
        %470 = vmatpush1.msra.mxu0 0.0
        %471 = vmatprep.subr.mxu0 0.0
        %472 = vmatpush1.msra.mxu0 0.0
        %473 = vmatprep.subr.mxu0 0.0
        %474 = vmatpush1.msra.mxu0 0.0
        %475 = vmatprep.subr.mxu0 0.0
        %476 = vmatpush1.msra.mxu0 0.0
        %477 = vmatprep.subr.mxu0 0.0
        %478 = vmatpush1.msra.mxu0 0.0
        %479 = vmatprep.subr.mxu0 0.0
        %480 = vmatpush1.msra.mxu0 0.0
        %481 = vmatprep.subr.mxu0 0.0
        %482 = vmatpush1.msra.mxu0 0.0
        %483 = vmatprep.subr.mxu0 0.0
        %484 = vmatpush1.msra.mxu0 0.0
        %485 = vmatprep.subr.mxu0 0.0
        %486 = vmatpush1.msra.mxu0 0.0
        %487 = vmatprep.subr.mxu0 0.0
        %488 = vmatpush1.msra.mxu0 0.0
        %489 = vmatprep.mubr.f32.mxu0 0.0
        %490 = vmatmul.mubr.f32.gmra.mrb[0].mxu0 %v241
        %v491 = vpop.f32.mrb[0].mxu0
        %v492 = vadd.f32 %v232, %v491
        %v493 = vpop.f32.mrb[0].mxu0
        %v494 = vadd.f32 %v232, %v493
        %495 = vmatprep.mubr.f32.mxu0 0.0
        %496 = vmatmul.mubr.f32.gmra.mrb[0].mxu0 %v244
        %v497 = vpop.f32.mrb[0].mxu0
        %v498 = vadd.f32 %v237, %v497
        %v499 = vpop.f32.mrb[0].mxu0
        %v500 = vadd.f32 %v237, %v499
        %501 = vdwg.mxu0
        %502 = vmatprep.subr.mxu0 %v412
        %503 = vmatpush1.msra.mxu0 %v411
        %504 = vmatprep.subr.mxu0 %v416
        %505 = vmatpush1.msra.mxu0 %v415
        %506 = vmatprep.subr.mxu0 %v420
        %507 = vmatpush1.msra.mxu0 %v419
        %508 = vmatprep.subr.mxu0 %v424
        %509 = vmatpush1.msra.mxu0 %v423
        %510 = vmatprep.subr.mxu0 0.0
        %511 = vmatpush1.msra.mxu0 0.0
        %512 = vmatprep.subr.mxu0 0.0
        %513 = vmatpush1.msra.mxu0 0.0
        %514 = vmatprep.subr.mxu0 0.0
        %515 = vmatpush1.msra.mxu0 0.0
        %516 = vmatprep.subr.mxu0 0.0
        %517 = vmatpush1.msra.mxu0 0.0
        %518 = vmatprep.subr.mxu0 0.0
        %519 = vmatpush1.msra.mxu0 0.0
        %520 = vmatprep.subr.mxu0 0.0
        %521 = vmatpush1.msra.mxu0 0.0
        %522 = vmatprep.subr.mxu0 0.0
        %523 = vmatpush1.msra.mxu0 0.0
        %524 = vmatprep.subr.mxu0 0.0
        %525 = vmatpush1.msra.mxu0 0.0
        %526 = vmatprep.subr.mxu0 0.0
        %527 = vmatpush1.msra.mxu0 0.0
        %528 = vmatprep.subr.mxu0 0.0
        %529 = vmatpush1.msra.mxu0 0.0
        %530 = vmatprep.subr.mxu0 0.0
        %531 = vmatpush1.msra.mxu0 0.0
        %532 = vmatprep.subr.mxu0 0.0
        %533 = vmatpush1.msra.mxu0 0.0
        %534 = vmatprep.subr.mxu0 0.0
        %535 = vmatpush1.msra.mxu0 0.0
        %536 = vmatprep.subr.mxu0 0.0
        %537 = vmatpush1.msra.mxu0 0.0
        %538 = vmatprep.subr.mxu0 0.0
        %539 = vmatpush1.msra.mxu0 0.0
        %540 = vmatprep.subr.mxu0 0.0
        %541 = vmatpush1.msra.mxu0 0.0
        %542 = vmatprep.subr.mxu0 0.0
        %543 = vmatpush1.msra.mxu0 0.0
        %544 = vmatprep.subr.mxu0 0.0
        %545 = vmatpush1.msra.mxu0 0.0
        %546 = vmatprep.subr.mxu0 0.0
        %547 = vmatpush1.msra.mxu0 0.0
        %548 = vmatprep.subr.mxu0 0.0
        %549 = vmatpush1.msra.mxu0 0.0
        %550 = vmatprep.subr.mxu0 0.0
        %551 = vmatpush1.msra.mxu0 0.0
        %552 = vmatprep.subr.mxu0 0.0
        %553 = vmatpush1.msra.mxu0 0.0
        %554 = vmatprep.subr.mxu0 0.0
        %555 = vmatpush1.msra.mxu0 0.0
        %556 = vmatprep.subr.mxu0 0.0
        %557 = vmatpush1.msra.mxu0 0.0
        %558 = vmatprep.subr.mxu0 0.0
        %559 = vmatpush1.msra.mxu0 0.0
        %560 = vmatprep.subr.mxu0 0.0
        %561 = vmatpush1.msra.mxu0 0.0
        %562 = vmatprep.subr.mxu0 0.0
        %563 = vmatpush1.msra.mxu0 0.0
        %564 = vmatprep.subr.mxu0 0.0
        %565 = vmatpush1.msra.mxu0 0.0
        %566 = vmatprep.mubr.f32.mxu0 0.0
        %567 = vmatmul.mubr.f32.gmra.mrb[0].mxu0 %v241
        %v568 = vpop.f32.mrb[0].mxu0
        %v569 = vadd.f32 %v232, %v568
        %v570 = vpop.f32.mrb[0].mxu0
        %v571 = vadd.f32 %v232, %v570
        %572 = vmatprep.mubr.f32.mxu0 0.0
        %573 = vmatmul.mubr.f32.gmra.mrb[0].mxu0 %v244
        %v574 = vpop.f32.mrb[0].mxu0
        %v575 = vadd.f32 %v237, %v574
        %v576 = vpop.f32.mrb[0].mxu0
        %v577 = vadd.f32 %v237, %v576
        %578 = vdwg.mxu0
        %s579 = scalar_lea.vmem %s206, 32 [#allocation5]
        %580 = vst [vmem:[%s579] sm:$0xff] %v492
        %581 = vst [vmem:[%s579 + $0x8] sm:$0xff] %v494
        %582 = vst [vmem:[%s579 + $0x10] sm:$0xff] %v569
        %583 = vst [vmem:[%s579 + $0x18] sm:$0xff] %v571
        %584 = vst [vmem:[%s579 + $0x40] sm:$0xff] %v498
        %585 = vst [vmem:[%s579 + $0x48] sm:$0xff] %v500
        %586 = vst [vmem:[%s579 + $0x50] sm:$0xff] %v575
        %587 = vst [vmem:[%s579 + $0x58] sm:$0xff] %v577
        %s588 = sand.u32 %s112, 1
        %s589 = scalar_lea.sflag [#allocation4], %s588
        %s590 = sand.u32 %s112, 1
        %s591 = smul.addr %s590, 128
        %s592 = scalar_lea.vmem [#allocation5], %s591
        // Predicated region
        $region37: #{tpu_custom_call.1} parent=31 // pred_check
          %p593 = pneg %p122
        $region38: #{tpu_custom_call.1} parent=31 // pred_check_branch
          %595 = sbr.rel (%p593) target = $region40
        $region39: #{tpu_custom_call.1} parent=31 // pred_region
          %s596 = smul.u32 8, %s25
          %s598 = ssub.s32 2048, 2048
          %599 = vsyncadd %s589, %s598
          %s600 = smul.addr %s24, 16
          %s601 = sadd.s32 %s596, %s600
          %s602 = smul.addr %s601, 128
          %s603 = scalar_lea.hbm %s3, %s602
          %s604 = sshll.u32 %s592, 4
          %s605 = int_to_ptr.vmem [resolvable:$true] %s604
          %610 = dma.vmem_to_hbm [thread:$0]  %s605, 2048, %s603, %s589, 1024, 1024, 64
        $region40: #{tpu_custom_call.1} parent=31 // pred_fallthru
          _
      $region32: #{tpu_custom_call.1} parent=5 // pred_fallthru
        _
      %p611 = scmp.le.s32.totalorder 2, %s15
      // Predicated region
      $region41: #{tpu_custom_call.1} parent=5 // pred_check
        %p612 = pneg %p611
      $region42: #{tpu_custom_call.1} parent=5 // pred_check_branch
        %614 = sbr.rel (%p612) target = $region44
      $region43: #{tpu_custom_call.1} parent=5 // pred_region
        %s615 = ssub.s32 %s15, 2
        // Predicated region
        $region45: #{tpu_custom_call.1} parent=43 // pred_check
          %p616 = pneg %p128
        $region46: #{tpu_custom_call.1} parent=43 // pred_check_branch
          %618 = sbr.rel (%p616) target = $region48
        $region47: #{tpu_custom_call.1} parent=43 // pred_region
          %s619 = sand.u32 %s113, 1
          %s620 = scalar_lea.sflag [#allocation4], %s619
          %s621 = sand.u32 %s113, 1
          %s622 = smul.addr %s621, 128
          %s623 = scalar_lea.vmem [#allocation5], %s622
          %624 = dma.done %s620, 2048
        $region48: #{tpu_custom_call.1} parent=43 // pred_fallthru
          _
      $region44: #{tpu_custom_call.1} parent=5 // pred_fallthru
        _
    $region6: #{tpu_custom_call.1} parent=1 // loop_footer
      %s19 = sadd.s32 1, %s15
    $region7: #{tpu_custom_call.1} parent=1 // loop_footer_branch
      %14 = sbr.rel target = $region3
    $region8: #{tpu_custom_call.1} parent=1 // loop_exit
      _
    %625 = vsyncpa [#allocation3], 1
    %s626 = scalar_lea.sflag [#allocation3], 1
    %627 = vsyncpa %s626, 1
    %628 = vsyncpa [#allocation4], 1
    %s629 = scalar_lea.sflag [#allocation4], 1
    %630 = vsyncpa %s629, 1

</llo_original>
